<compile_context>
chip_gen: v5e
topology: v5e:2x2
jax: 0.10.0
libtpu: 0.0.40
codegen_flags: <defaults>
</compile_context>

<pallas_src>
import functools

import jax
import jax.numpy as jnp
from jax.experimental import pallas as pl
from jax.experimental.pallas import tpu as pltpu

# ---------------- model / problem configuration (module defaults, small) ----------------
B = 2             # batch
S = 128           # seq_len
CIN = 8           # d_input
COUT = 64         # d_another_h[0]
K = 3             # conv kernel_size
DOUT = 1          # d_output
L = S - K + 1                 # 126  valid conv output length
PK = S - COUT + 1             # 65   MaxPool1d kernel_size (= stride), as in the module
P = (L - PK) // PK + 1        # 1    pooled length (module's view()/fc implicitly assumes P == 1)


# ---------------------------------- Pallas kernel ---------------------------------------
def seqcnn_kernel(x_ref, wc_ref, bcwf_ref, bf_ref, o_ref,
                  *, batch, rows, cin, cout, ktaps):
    """Conv1d(k=3) + bias + ReLU + MaxPool1d(single window) + Linear(COUT->1) + Sigmoid.

    x_ref   : (B, S, CIN)   f32  VMEM  -- raw module input; im2col happens in here
    wc_ref  : (K*CIN, COUT) bf16 VMEM  -- conv weight, tap-major rows (pre-laid-out at init)
    bcwf_ref: (2, COUT)     f32  VMEM  -- row 0 = conv bias, row 1 = fc weight (merged DMA)
    bf_ref  : (1,)          f32  SMEM  -- fc bias scalar
    o_ref   : (B, DOUT)     f32  VMEM
    """
    bias = bcwf_ref[0:1, :]                      # (1, COUT) conv bias
    wf = bcwf_ref[1:2, :]                        # (1, COUT) fc weight

    pooled = []
    for b in range(batch):                       # static unroll; B is tiny, kernel is latency-bound
        xb = x_ref[b]                            # (S, CIN) f32 — one slab load per batch element
        acc = jnp.zeros((rows, cout), jnp.float32)
        for k in range(ktaps):                   # conv as K accumulated MXU dots (in-kernel im2col)
            xk = xb[k:k + rows, :].astype(jnp.bfloat16)        # (PK, CIN)  bf16 MXU operand
            wk = wc_ref[k * cin:(k + 1) * cin, :]              # (CIN, COUT) bf16, 8-aligned slice
            acc = acc + jnp.dot(xk, wk, preferred_element_type=jnp.float32)
        conv = jnp.maximum(acc + bias, 0.0)                    # bias + ReLU (f32, VPU)
        # MaxPool1d: the single pool window is exactly these `rows` = PK conv rows, so a
        # plain sublane max-reduce is the pool — no padding/masking invariant needed.
        pooled.append(jnp.max(conv, axis=0, keepdims=True))    # (1, COUT)
    pooled = jnp.concatenate(pooled, axis=0)                   # (B, COUT)

    # FC (COUT -> 1): VPU multiply + XLU lane reduce (1-lane-wide MXU push would be wasted).
    logits = jnp.sum(pooled * wf, axis=-1, keepdims=True) + bf_ref[0]   # (B, 1) f32
    o_ref[...] = jax.nn.sigmoid(logits)                                 # EUP exp


# -------------------------- one-time parameter preparation ------------------------------
def prepare_params(wc_torch, bc, wf_torch, bf):
    """Re-layout weights ONCE at parameter-load time (NOT in the per-call forward path)."""
    # Conv1d weight (COUT, CIN, K) -> (K*CIN, COUT), tap-major rows matching the kernel slices.
    wc = jnp.transpose(wc_torch, (2, 1, 0)).reshape(K * CIN, COUT).astype(jnp.bfloat16)
    # Conv bias and fc weight share one (2, COUT) f32 input (one DMA instead of two).
    bcwf = jnp.stack([bc.astype(jnp.float32),
                      wf_torch.reshape(COUT).astype(jnp.float32)], axis=0)
    bf_s = bf.reshape(DOUT).astype(jnp.float32)
    return wc, bcwf, bf_s


# ------------------------------------- forward ------------------------------------------
def sequence_cnn_forward(x, params):
    """x: (B, S, CIN) float32 (the module's input *before* its internal permute).
       params: output of prepare_params(). The forward path is a single pallas_call."""
    assert P == 1, "SequenceCNN's view()/fc only makes sense when pooling yields length 1"
    assert DOUT == 1
    # TODO(synk): general P>1 pooling (PyTorch's view() would scramble channels/batch there).
    wc, bcwf, bf_s = params

    kernel = functools.partial(seqcnn_kernel, batch=B, rows=PK, cin=CIN, cout=COUT, ktaps=K)
    vmem = pl.BlockSpec(memory_space=pltpu.MemorySpace.VMEM)
    smem = pl.BlockSpec(memory_space=pltpu.MemorySpace.SMEM)
    cost = pl.CostEstimate(
        flops=2 * B * PK * K * CIN * COUT,
        transcendentals=B * DOUT,
        bytes_accessed=(B * S * CIN * 4) + (K * CIN * COUT * 2) + (2 * COUT * 4) + 4 + (B * DOUT * 4))

    # grid=() — total resident data ~12 KB, far under VMEM on v5e/v6e/v7x; no tiling, and no
    # megacore batch split at B=2 (per-step overhead + duplicated DMAs would be a regression).
    # TODO(synk): only shard batch across v7x's two TensorCores once B*PK is a few hundred
    #             sublane rows per core (B in the tens+), and re-derive sizes vs 64 MiB VMEM.
    return pl.pallas_call(
        kernel,
        out_shape=jax.ShapeDtypeStruct((B, DOUT), jnp.float32),
        in_specs=[vmem, vmem, vmem, smem],
        out_specs=vmem,
        cost_estimate=cost,
    )(x, wc, bcwf, bf_s)


# ------------------------------ pure-JAX references -------------------------------------
def _reference(x, wc_torch, bc, wf_torch, bf):
    hp = jax.lax.Precision.HIGHEST
    xp = jnp.transpose(x, (0, 2, 1))                                      # (B, CIN, S)
    conv = sum(jnp.einsum('bcs,oc->bos', xp[:, :, k:k + L], wc_torch[:, :, k], precision=hp)
               for k in range(K)) + bc[None, :, None]                     # (B, COUT, L)
    conv = jnp.maximum(conv, 0.0)
    pooled = jnp.max(conv[:, :, :PK], axis=2)                             # (B, COUT), P == 1
    return jax.nn.sigmoid(jnp.dot(pooled, wf_torch.T, precision=hp) + bf[None, :])


def reference_forward(x, wc_torch, bc, wf_torch, bf):
    """True f32 module semantics."""
    return _reference(x.astype(jnp.float32), wc_torch.astype(jnp.float32), bc, wf_torch, bf)


def reference_forward_bf16_inputs(x, wc_torch, bc, wf_torch, bf):
    """Same math but with the conv MXU operands rounded to bf16, as the kernel does."""
    x_bf = x.astype(jnp.bfloat16).astype(jnp.float32)
    wc_bf = wc_torch.astype(jnp.bfloat16).astype(jnp.float32)
    return _reference(x_bf, wc_bf, bc, wf_torch, bf)


# --------------------------------------- main -------------------------------------------
if __name__ == "__main__":
    key = jax.random.PRNGKey(0)
    kx, k1, k2, k3, k4 = jax.random.split(key, 5)

    x = jax.random.normal(kx, (B, S, CIN), dtype=jnp.float32)

    # deterministic parameter init (PyTorch-like uniform bounds)
    conv_bound = 1.0 / jnp.sqrt(CIN * K)
    fc_bound = 1.0 / jnp.sqrt(COUT)
    wc_torch = jax.random.uniform(k1, (COUT, CIN, K), jnp.float32, -conv_bound, conv_bound)
    bc = jax.random.uniform(k2, (COUT,), jnp.float32, -conv_bound, conv_bound)
    wf_torch = jax.random.uniform(k3, (DOUT, COUT), jnp.float32, -fc_bound, fc_bound)
    bf = jax.random.uniform(k4, (DOUT,), jnp.float32, -fc_bound, fc_bound)

    # One-time weight re-layout (parameter-load time, not per forward call).
    params = prepare_params(wc_torch, bc, wf_torch, bf)

    out = jax.block_until_ready(sequence_cnn_forward(x, params))
    assert out.shape == (B, DOUT)

    # Tight check vs. a reference whose conv inputs carry the same bf16 rounding.
    ref_bf16 = reference_forward_bf16_inputs(x, wc_torch, bc, wf_torch, bf)
    assert jnp.allclose(out, ref_bf16, rtol=1e-4, atol=1e-4), (out, ref_bf16)

    # Looser check vs. the pure-f32 module semantics (bf16 MXU operands, per perf review).
    ref_f32 = reference_forward(x, wc_torch, bc, wf_torch, bf)
    assert jnp.allclose(out, ref_f32, rtol=2e-2, atol=5e-3), (out, ref_f32)

    print("KERNEL_OK")
</pallas_src>

<mosaic_0001>
module attributes {stable_mosaic.version = 11 : i64} {
  func.func @seqcnn_kernel(%arg0: memref<2x128x8xf32, #tpu.memory_space<vmem>>, %arg1: memref<24x64xbf16, #tpu.memory_space<vmem>>, %arg2: memref<2x64xf32, #tpu.memory_space<vmem>>, %arg3: memref<1xf32, #tpu.memory_space<smem>>, %arg4: memref<2x1xf32, #tpu.memory_space<vmem>>) attributes {dimension_semantics = [], scalar_prefetch = 0 : i64, scratch_operands = 0 : i64, tpu.core_type = #tpu.core_type<tc>} {
    %c0 = arith.constant 0 : index
    %c0_0 = arith.constant 0 : index
    %0 = vector.load %arg2[%c0, %c0_0] : memref<2x64xf32, #tpu.memory_space<vmem>>, vector<1x64xf32>
    %c1 = arith.constant 1 : index
    %c0_1 = arith.constant 0 : index
    %1 = vector.load %arg2[%c1, %c0_1] : memref<2x64xf32, #tpu.memory_space<vmem>>, vector<1x64xf32>
    %c0_2 = arith.constant 0 : index
    %c0_3 = arith.constant 0 : index
    %c0_4 = arith.constant 0 : index
    %2 = vector.load %arg0[%c0_2, %c0_3, %c0_4] : memref<2x128x8xf32, #tpu.memory_space<vmem>>, vector<1x128x8xf32>
    %3 = vector.shape_cast %2 : vector<1x128x8xf32> to vector<128x8xf32>
    %cst = arith.constant 0.000000e+00 : f32
    %4 = vector.broadcast %cst : f32 to vector<65x64xf32>
    %5 = vector.extract_strided_slice %3 {offsets = [0, 0], sizes = [65, 8], strides = [1, 1]} : vector<128x8xf32> to vector<65x8xf32>
    %6 = arith.truncf %5 : vector<65x8xf32> to vector<65x8xbf16>
    %c0_5 = arith.constant 0 : index
    %c0_6 = arith.constant 0 : index
    %7 = vector.load %arg1[%c0_5, %c0_6] : memref<24x64xbf16, #tpu.memory_space<vmem>>, vector<8x64xbf16>
    %cst_7 = arith.constant dense<0.000000e+00> : vector<65x64xf32>
    %8 = tpu.matmul %6, %7, %cst_7 {dimension_numbers = #tpu.dot_dimension_numbers<[1], [0], [0], [1], [0, 0, 1, 1], [], []>} : vector<65x8xbf16>, vector<8x64xbf16>, vector<65x64xf32> -> vector<65x64xf32>
    %9 = arith.addf %4, %8 : vector<65x64xf32>
    %10 = vector.extract_strided_slice %3 {offsets = [1, 0], sizes = [65, 8], strides = [1, 1]} : vector<128x8xf32> to vector<65x8xf32>
    %11 = arith.truncf %10 : vector<65x8xf32> to vector<65x8xbf16>
    %c8 = arith.constant 8 : index
    %c0_8 = arith.constant 0 : index
    %12 = vector.load %arg1[%c8, %c0_8] : memref<24x64xbf16, #tpu.memory_space<vmem>>, vector<8x64xbf16>
    %cst_9 = arith.constant dense<0.000000e+00> : vector<65x64xf32>
    %13 = tpu.matmul %11, %12, %cst_9 {dimension_numbers = #tpu.dot_dimension_numbers<[1], [0], [0], [1], [0, 0, 1, 1], [], []>} : vector<65x8xbf16>, vector<8x64xbf16>, vector<65x64xf32> -> vector<65x64xf32>
    %14 = arith.addf %9, %13 : vector<65x64xf32>
    %15 = vector.extract_strided_slice %3 {offsets = [2, 0], sizes = [65, 8], strides = [1, 1]} : vector<128x8xf32> to vector<65x8xf32>
    %16 = arith.truncf %15 : vector<65x8xf32> to vector<65x8xbf16>
    %c16 = arith.constant 16 : index
    %c0_10 = arith.constant 0 : index
    %17 = vector.load %arg1[%c16, %c0_10] : memref<24x64xbf16, #tpu.memory_space<vmem>>, vector<8x64xbf16>
    %cst_11 = arith.constant dense<0.000000e+00> : vector<65x64xf32>
    %18 = tpu.matmul %16, %17, %cst_11 {dimension_numbers = #tpu.dot_dimension_numbers<[1], [0], [0], [1], [0, 0, 1, 1], [], []>} : vector<65x8xbf16>, vector<8x64xbf16>, vector<65x64xf32> -> vector<65x64xf32>
    %19 = arith.addf %14, %18 : vector<65x64xf32>
    %20 = vector.broadcast %0 : vector<1x64xf32> to vector<65x64xf32>
    %21 = arith.addf %19, %20 : vector<65x64xf32>
    %cst_12 = arith.constant 0.000000e+00 : f32
    %22 = vector.broadcast %cst_12 : f32 to vector<65x64xf32>
    %23 = arith.maximumf %21, %22 : vector<65x64xf32>
    %cst_13 = arith.constant dense<0xFF800000> : vector<64xf32>
    %24 = vector.multi_reduction <maximumf>, %23, %cst_13 [0] : vector<65x64xf32> to vector<64xf32>
    %25 = vector.shape_cast %24 : vector<64xf32> to vector<1x64xf32>
    %c1_14 = arith.constant 1 : index
    %c0_15 = arith.constant 0 : index
    %c0_16 = arith.constant 0 : index
    %26 = vector.load %arg0[%c1_14, %c0_15, %c0_16] : memref<2x128x8xf32, #tpu.memory_space<vmem>>, vector<1x128x8xf32>
    %27 = vector.shape_cast %26 : vector<1x128x8xf32> to vector<128x8xf32>
    %cst_17 = arith.constant 0.000000e+00 : f32
    %28 = vector.broadcast %cst_17 : f32 to vector<65x64xf32>
    %29 = vector.extract_strided_slice %27 {offsets = [0, 0], sizes = [65, 8], strides = [1, 1]} : vector<128x8xf32> to vector<65x8xf32>
    %30 = arith.truncf %29 : vector<65x8xf32> to vector<65x8xbf16>
    %c0_18 = arith.constant 0 : index
    %c0_19 = arith.constant 0 : index
    %31 = vector.load %arg1[%c0_18, %c0_19] : memref<24x64xbf16, #tpu.memory_space<vmem>>, vector<8x64xbf16>
    %cst_20 = arith.constant dense<0.000000e+00> : vector<65x64xf32>
    %32 = tpu.matmul %30, %31, %cst_20 {dimension_numbers = #tpu.dot_dimension_numbers<[1], [0], [0], [1], [0, 0, 1, 1], [], []>} : vector<65x8xbf16>, vector<8x64xbf16>, vector<65x64xf32> -> vector<65x64xf32>
    %33 = arith.addf %28, %32 : vector<65x64xf32>
    %34 = vector.extract_strided_slice %27 {offsets = [1, 0], sizes = [65, 8], strides = [1, 1]} : vector<128x8xf32> to vector<65x8xf32>
    %35 = arith.truncf %34 : vector<65x8xf32> to vector<65x8xbf16>
    %c8_21 = arith.constant 8 : index
    %c0_22 = arith.constant 0 : index
    %36 = vector.load %arg1[%c8_21, %c0_22] : memref<24x64xbf16, #tpu.memory_space<vmem>>, vector<8x64xbf16>
    %cst_23 = arith.constant dense<0.000000e+00> : vector<65x64xf32>
    %37 = tpu.matmul %35, %36, %cst_23 {dimension_numbers = #tpu.dot_dimension_numbers<[1], [0], [0], [1], [0, 0, 1, 1], [], []>} : vector<65x8xbf16>, vector<8x64xbf16>, vector<65x64xf32> -> vector<65x64xf32>
    %38 = arith.addf %33, %37 : vector<65x64xf32>
    %39 = vector.extract_strided_slice %27 {offsets = [2, 0], sizes = [65, 8], strides = [1, 1]} : vector<128x8xf32> to vector<65x8xf32>
    %40 = arith.truncf %39 : vector<65x8xf32> to vector<65x8xbf16>
    %c16_24 = arith.constant 16 : index
    %c0_25 = arith.constant 0 : index
    %41 = vector.load %arg1[%c16_24, %c0_25] : memref<24x64xbf16, #tpu.memory_space<vmem>>, vector<8x64xbf16>
    %cst_26 = arith.constant dense<0.000000e+00> : vector<65x64xf32>
    %42 = tpu.matmul %40, %41, %cst_26 {dimension_numbers = #tpu.dot_dimension_numbers<[1], [0], [0], [1], [0, 0, 1, 1], [], []>} : vector<65x8xbf16>, vector<8x64xbf16>, vector<65x64xf32> -> vector<65x64xf32>
    %43 = arith.addf %38, %42 : vector<65x64xf32>
    %44 = vector.broadcast %0 : vector<1x64xf32> to vector<65x64xf32>
    %45 = arith.addf %43, %44 : vector<65x64xf32>
    %cst_27 = arith.constant 0.000000e+00 : f32
    %46 = vector.broadcast %cst_27 : f32 to vector<65x64xf32>
    %47 = arith.maximumf %45, %46 : vector<65x64xf32>
    %cst_28 = arith.constant dense<0xFF800000> : vector<64xf32>
    %48 = vector.multi_reduction <maximumf>, %47, %cst_28 [0] : vector<65x64xf32> to vector<64xf32>
    %49 = vector.shape_cast %48 : vector<64xf32> to vector<1x64xf32>
    %50 = tpu.concatenate %25, %49 in 0 : vector<1x64xf32>, vector<1x64xf32> -> vector<2x64xf32>
    %51 = vector.broadcast %1 : vector<1x64xf32> to vector<2x64xf32>
    %52 = arith.mulf %50, %51 : vector<2x64xf32>
    %cst_29 = arith.constant dense<0.000000e+00> : vector<2xf32>
    %53 = vector.multi_reduction <add>, %52, %cst_29 [1] : vector<2x64xf32> to vector<2xf32>
    %54 = vector.shape_cast %53 : vector<2xf32> to vector<2x1xf32>
    %c0_30 = arith.constant 0 : index
    %55 = memref.load %arg3[%c0_30] : memref<1xf32, #tpu.memory_space<smem>>
    %56 = vector.broadcast %55 : f32 to vector<2x1xf32>
    %57 = arith.addf %54, %56 : vector<2x1xf32>
    %58 = arith.negf %57 : vector<2x1xf32>
    %59 = math.exp %58 : vector<2x1xf32>
    %cst_31 = arith.constant 1.000000e+00 : f32
    %60 = vector.broadcast %cst_31 : f32 to vector<2x1xf32>
    %61 = arith.addf %60, %59 : vector<2x1xf32>
    %62 = arith.divf %60, %61 : vector<2x1xf32>
    %c0_32 = arith.constant 0 : index
    %c0_33 = arith.constant 0 : index
    %63 = vector.load %arg4[%c0_32, %c0_33] : memref<2x1xf32, #tpu.memory_space<vmem>>, vector<2x1xf32>
    tpu.vector_store %arg4[%c0_32, %c0_33], %62 {strides = array<i32>} : memref<2x1xf32, #tpu.memory_space<vmem>>, vector<2x1xf32>,
    return
  }
}

</mosaic_0001>

<llo_original>
// kernel: tpu_custom_call.1
$region0: #{tpu_custom_call.1}
  #allocation0 [shape = 'u32[]', space=smem, size = 0x4, offset = 0x4, fixed_abs, tag = 'smem constant byte address 0x4 - core index']
  #allocation1 [shape = 'u32[72,128]{1,0:T(1,128)}', space=vmem, size = 0x9000, scoped, tag = 'internal scratch']
  #allocation2 [shape = 'f32[1]{0:T(128)S(6)}', space=smem, size = 0x200, scoped, tag = 'scoped memory for tpu_custom_call.1']
  %s0 = inlined_call_operand.vmem [shape: f32[2,128,8], index: 0, kind: input, shape index: {}]
  %s1 = inlined_call_operand.vmem [shape: bf16[24,64], index: 1, kind: input, shape index: {}]
  %s2 = inlined_call_operand.vmem [shape: f32[2,64], index: 2, kind: input, shape index: {}]
  %s3 = inlined_call_operand.<no memory space> [shape: f32[1], index: 3, kind: input, shape index: {}]
  %s4 = inlined_call_operand.vmem [shape: f32[2,1], index: 4, kind: output, shape index: {}]
  %s5 = sld [smem:[#allocation0]]
  $region26: #{tpu_custom_call.1} parent=0
    _
  %s7 = ssub.s32 1, %s5
  %s8 = scalar_select 0, %s7, %s5
  %9 = sst [smem:[#allocation2]] %s3
  // Predicated region
  $region2: #{tpu_custom_call.1} parent=0 // pred_check
    _
  $region3: #{tpu_custom_call.1} parent=0 // pred_check_branch
    %11 = sbr.rel (0) target = $region5
  $region4: #{tpu_custom_call.1} parent=0 // pred_region
    _
  $region5: #{tpu_custom_call.1} parent=0 // pred_fallthru
    _
  // Predicated region
  $region6: #{tpu_custom_call.1} parent=0 // pred_check
    _
  $region7: #{tpu_custom_call.1} parent=0 // pred_check_branch
    %13 = sbr.rel (0) target = $region9
  $region8: #{tpu_custom_call.1} parent=0 // pred_region
    _
  $region9: #{tpu_custom_call.1} parent=0 // pred_fallthru
    _
  // Predicated region
  $region10: #{tpu_custom_call.1} parent=0 // pred_check
    _
  $region11: #{tpu_custom_call.1} parent=0 // pred_check_branch
    %15 = sbr.rel (0) target = $region13
  $region12: #{tpu_custom_call.1} parent=0 // pred_region
    _
  $region13: #{tpu_custom_call.1} parent=0 // pred_fallthru
    _
  // Predicated region
  $region14: #{tpu_custom_call.1} parent=0 // pred_check
    _
  $region15: #{tpu_custom_call.1} parent=0 // pred_check_branch
    %17 = sbr.rel (0) target = $region17
  $region16: #{tpu_custom_call.1} parent=0 // pred_region
    _
  $region17: #{tpu_custom_call.1} parent=0 // pred_fallthru
    _
  %v19 = vld [vmem:[%s2] sm:$0x1]
  %v20 = vld [vmem:[%s2 + $0x1] sm:$0x1]
  %v21 = vld [vmem:[%s0] sm:$0xff]
  %v22 = vld [vmem:[%s0 + $0x8] sm:$0xff]
  %v23 = vld [vmem:[%s0 + $0x10] sm:$0xff]
  %v24 = vld [vmem:[%s0 + $0x18] sm:$0xff]
  %v25 = vld [vmem:[%s0 + $0x20] sm:$0xff]
  %v26 = vld [vmem:[%s0 + $0x28] sm:$0xff]
  %v27 = vld [vmem:[%s0 + $0x30] sm:$0xff]
  %v28 = vld [vmem:[%s0 + $0x38] sm:$0xff]
  %v29 = vld [vmem:[%s0 + $0x40] sm:$0xff]
  %v30 = vpack.c.bf16 %v22, %v21
  %v31 = vpack.c.bf16 %v24, %v23
  %v32 = vpack.c.bf16 %v26, %v25
  %v33 = vpack.c.bf16 %v28, %v27
  %v34 = vpack.c.bf16 %v29, %v29
  %v35 = vld [vmem:[%s1] sm:$0xf]
  %v36 = vld [vmem:[%s1 + $0x4] sm:$0xf]
  %vm37 = vsmask.f32 7424
  %v39 = vshrl.u32 %v30, 16
  %v41 = vshll.u32 %v30, 16
  %v43 = vrot.slane %v41, 1
  %v44 = vor.u32 %v39, %v43
  %v46 = vshll.u32 %v31, 16
  %v48 = vrot.slane %v46, 1
  %v49 = vsel %vm37, %v44, %v48
  %v50 = vshrl.u32 %v31, 16
  %v52 = vor.u32 %v50, %v48
  %v54 = vshll.u32 %v32, 16
  %v56 = vrot.slane %v54, 1
  %v57 = vsel %vm37, %v52, %v56
  %v58 = vshrl.u32 %v32, 16
  %v60 = vor.u32 %v58, %v56
  %v62 = vshll.u32 %v33, 16
  %v64 = vrot.slane %v62, 1
  %v65 = vsel %vm37, %v60, %v64
  %v66 = vshrl.u32 %v33, 16
  %v68 = vor.u32 %v66, %v64
  %v70 = vshll.u32 %v34, 16
  %v72 = vrot.slane %v70, 1
  %v73 = vsel %vm37, %v68, %v72
  %v74 = vshrl.u32 %v34, 16
  %vm76 = vcmask 64512
  %v78 = vsel %vm76, %v49, 0
  %v81 = vsel %vm76, %v57, 0
  %v84 = vsel %vm76, %v65, 0
  %v87 = vsel %vm76, %v73, 0
  %v90 = vsel %vm76, %v74, 0
  %vm92 = vcmask 1043456
  %v94 = vsel %vm92, %v36, 0
  %96 = vmatpush.bf16.msra.mxu0 0
  %97 = vmatpush.bf16.msra.mxu0 0
  %98 = vmatpush.bf16.msra.mxu0 0
  %99 = vmatpush.bf16.msra.mxu0 0
  %100 = vmatpush.bf16.msra.mxu0 0
  %101 = vmatpush.bf16.msra.mxu0 0
  %102 = vmatpush.bf16.msra.mxu0 0
  %103 = vmatpush.bf16.msra.mxu0 %v94
  %104 = vmatmul.bf16.gmra.mxu0 %v78
  %v105 = vpop.f32.mrf.mxu0
  %v106 = vadd.f32 0.0, %v105
  %v107 = vpop.f32.mrf.mxu0
  %v108 = vadd.f32 0.0, %v107
  %109 = vmatmul.bf16.gmra.mxu0 %v81
  %v110 = vpop.f32.mrf.mxu0
  %v111 = vadd.f32 0.0, %v110
  %v112 = vpop.f32.mrf.mxu0
  %v113 = vadd.f32 0.0, %v112
  %114 = vmatmul.bf16.gmra.mxu0 %v84
  %v115 = vpop.f32.mrf.mxu0
  %v116 = vadd.f32 0.0, %v115
  %v117 = vpop.f32.mrf.mxu0
  %v118 = vadd.f32 0.0, %v117
  %119 = vmatmul.bf16.gmra.mxu0 %v87
  %v120 = vpop.f32.mrf.mxu0
  %v121 = vadd.f32 0.0, %v120
  %v122 = vpop.f32.mrf.mxu0
  %v123 = vadd.f32 0.0, %v122
  %124 = vmatmul.bf16.gmra.mxu0 %v90
  %v125 = vpop.f32.mrf.mxu0
  %v126 = vadd.f32 0.0, %v125
  %v127 = vpop.f32.mrf.mxu0
  %128 = vdwg.mxu0
  %v129 = vsel %vm76, %v30, 0
  %v131 = vsel %vm76, %v31, 0
  %v133 = vsel %vm76, %v32, 0
  %v135 = vsel %vm76, %v33, 0
  %v137 = vsel %vm76, %v34, 0
  %v140 = vsel %vm92, %v35, 0
  %142 = vmatpush.bf16.msra.mxu0 0
  %143 = vmatpush.bf16.msra.mxu0 0
  %144 = vmatpush.bf16.msra.mxu0 0
  %145 = vmatpush.bf16.msra.mxu0 0
  %146 = vmatpush.bf16.msra.mxu0 0
  %147 = vmatpush.bf16.msra.mxu0 0
  %148 = vmatpush.bf16.msra.mxu0 0
  %149 = vmatpush.bf16.msra.mxu0 %v140
  %150 = vmatmul.bf16.gmra.mxu0 %v129
  %v151 = vpop.f32.mrf.mxu0
  %v152 = vadd.f32 %v106, %v151
  %v153 = vpop.f32.mrf.mxu0
  %v154 = vadd.f32 %v108, %v153
  %155 = vmatmul.bf16.gmra.mxu0 %v131
  %v156 = vpop.f32.mrf.mxu0
  %v157 = vadd.f32 %v111, %v156
  %v158 = vpop.f32.mrf.mxu0
  %v159 = vadd.f32 %v113, %v158
  %160 = vmatmul.bf16.gmra.mxu0 %v133
  %v161 = vpop.f32.mrf.mxu0
  %v162 = vadd.f32 %v116, %v161
  %v163 = vpop.f32.mrf.mxu0
  %v164 = vadd.f32 %v118, %v163
  %165 = vmatmul.bf16.gmra.mxu0 %v135
  %v166 = vpop.f32.mrf.mxu0
  %v167 = vadd.f32 %v121, %v166
  %v168 = vpop.f32.mrf.mxu0
  %v169 = vadd.f32 %v123, %v168
  %170 = vmatmul.bf16.gmra.mxu0 %v137
  %v171 = vpop.f32.mrf.mxu0
  %v172 = vadd.f32 %v126, %v171
  %v173 = vpop.f32.mrf.mxu0
  %174 = vdwg.mxu0
  %v175 = vld [vmem:[%s1 + $0x8] sm:$0xf]
  %vm181 = vcmask 1046528
  %v182 = vrot.slane %v30, 1
  %v183 = vrot.slane %v31, 1
  %v184 = vsel %vm181, %v182, %v183
  %v185 = vrot.slane %v32, 1
  %v186 = vsel %vm181, %v183, %v185
  %v187 = vrot.slane %v33, 1
  %v188 = vsel %vm181, %v185, %v187
  %v189 = vrot.slane %v34, 1
  %v190 = vsel %vm181, %v187, %v189
  %v192 = vsel %vm76, %v184, 0
  %v195 = vsel %vm76, %v186, 0
  %v198 = vsel %vm76, %v188, 0
  %v201 = vsel %vm76, %v190, 0
  %v204 = vsel %vm76, %v189, 0
  %v207 = vsel %vm92, %v175, 0
  %209 = vmatpush.bf16.msra.mxu0 0
  %210 = vmatpush.bf16.msra.mxu0 0
  %211 = vmatpush.bf16.msra.mxu0 0
  %212 = vmatpush.bf16.msra.mxu0 0
  %213 = vmatpush.bf16.msra.mxu0 0
  %214 = vmatpush.bf16.msra.mxu0 0
  %215 = vmatpush.bf16.msra.mxu0 0
  %216 = vmatpush.bf16.msra.mxu0 %v207
  %217 = vmatmul.bf16.gmra.mxu0 %v192
  %v218 = vpop.f32.mrf.mxu0
  %v219 = vadd.f32 0.0, %v218
  %v220 = vpop.f32.mrf.mxu0
  %v221 = vadd.f32 0.0, %v220
  %222 = vmatmul.bf16.gmra.mxu0 %v195
  %v223 = vpop.f32.mrf.mxu0
  %v224 = vadd.f32 0.0, %v223
  %v225 = vpop.f32.mrf.mxu0
  %v226 = vadd.f32 0.0, %v225
  %227 = vmatmul.bf16.gmra.mxu0 %v198
  %v228 = vpop.f32.mrf.mxu0
  %v229 = vadd.f32 0.0, %v228
  %v230 = vpop.f32.mrf.mxu0
  %v231 = vadd.f32 0.0, %v230
  %232 = vmatmul.bf16.gmra.mxu0 %v201
  %v233 = vpop.f32.mrf.mxu0
  %v234 = vadd.f32 0.0, %v233
  %v235 = vpop.f32.mrf.mxu0
  %v236 = vadd.f32 0.0, %v235
  %237 = vmatmul.bf16.gmra.mxu0 %v204
  %v238 = vpop.f32.mrf.mxu0
  %v239 = vadd.f32 0.0, %v238
  %v240 = vpop.f32.mrf.mxu0
  %241 = vdwg.mxu0
  %v242 = vadd.f32 %v152, %v219
  %v243 = vadd.f32 %v154, %v221
  %v244 = vadd.f32 %v157, %v224
  %v245 = vadd.f32 %v159, %v226
  %v246 = vadd.f32 %v162, %v229
  %v247 = vadd.f32 %v164, %v231
  %v248 = vadd.f32 %v167, %v234
  %v249 = vadd.f32 %v169, %v236
  %v250 = vadd.f32 %v172, %v239
  %v251 = vperm.slane %v19, 0
  %v252 = vadd.f32 %v242, %v251
  %v253 = vadd.f32 %v243, %v251
  %v254 = vadd.f32 %v244, %v251
  %v255 = vadd.f32 %v245, %v251
  %v256 = vadd.f32 %v246, %v251
  %v257 = vadd.f32 %v247, %v251
  %v258 = vadd.f32 %v248, %v251
  %v259 = vadd.f32 %v249, %v251
  %v260 = vadd.f32 %v250, %v251
  %v261 = vmax.f32 %v252, 0.0
  %v262 = vmax.f32 %v253, 0.0
  %v263 = vmax.f32 %v254, 0.0
  %v264 = vmax.f32 %v255, 0.0
  %v265 = vmax.f32 %v256, 0.0
  %v266 = vmax.f32 %v257, 0.0
  %v267 = vmax.f32 %v258, 0.0
  %v268 = vmax.f32 %v259, 0.0
  %v269 = vmax.f32 %v260, 0.0
  %vm270 = vcmask 523264
  %v271 = vsel %vm270, %v261, -inf
  %v272 = vsel %vm270, %v262, -inf
  %v273 = vsel %vm270, %v263, -inf
  %v274 = vsel %vm270, %v264, -inf
  %v275 = vsel %vm270, %v265, -inf
  %v276 = vmax.f32 %v271, %v275
  %v277 = vsel %vm270, %v266, -inf
  %v278 = vmax.f32 %v272, %v277
  %v279 = vsel %vm270, %v267, -inf
  %v280 = vmax.f32 %v273, %v279
  %v281 = vsel %vm270, %v268, -inf
  %v282 = vmax.f32 %v274, %v281
  %vm283 = vcmask 516096
  %v284 = vsel %vm283, %v269, -inf
  %v285 = vmax.f32 %v276, %v284
  %v286 = vmax.f32 %v285, %v278
  %v287 = vmax.f32 %v280, %v282
  %v288 = vmax.f32 %v286, %v287
  %v289 = vrot.slane %v288, 4
  %v290 = vmax.f32 %v288, %v289
  %v291 = vrot.slane %v290, 2
  %v292 = vmax.f32 %v290, %v291
  %v293 = vrot.slane %v292, 1
  %v294 = vmax.f32 %v292, %v293
  %s295 = scalar_lea.vmem %s0, 128
  %v296 = vld [vmem:[%s295] sm:$0xff]
  %v297 = vld [vmem:[%s295 + $0x8] sm:$0xff]
  %v298 = vld [vmem:[%s295 + $0x10] sm:$0xff]
  %v299 = vld [vmem:[%s295 + $0x18] sm:$0xff]
  %v300 = vld [vmem:[%s295 + $0x20] sm:$0xff]
  %v301 = vld [vmem:[%s295 + $0x28] sm:$0xff]
  %v302 = vld [vmem:[%s295 + $0x30] sm:$0xff]
  %v303 = vld [vmem:[%s295 + $0x38] sm:$0xff]
  %v304 = vld [vmem:[%s295 + $0x40] sm:$0xff]
  %v305 = vpack.c.bf16 %v297, %v296
  %v306 = vpack.c.bf16 %v299, %v298
  %v307 = vpack.c.bf16 %v301, %v300
  %v308 = vpack.c.bf16 %v303, %v302
  %v309 = vpack.c.bf16 %v304, %v304
  %v311 = vshrl.u32 %v305, 16
  %v313 = vshll.u32 %v305, 16
  %v315 = vrot.slane %v313, 1
  %v316 = vor.u32 %v311, %v315
  %v318 = vshll.u32 %v306, 16
  %v320 = vrot.slane %v318, 1
  %v321 = vsel %vm37, %v316, %v320
  %v322 = vshrl.u32 %v306, 16
  %v324 = vor.u32 %v322, %v320
  %v326 = vshll.u32 %v307, 16
  %v328 = vrot.slane %v326, 1
  %v329 = vsel %vm37, %v324, %v328
  %v330 = vshrl.u32 %v307, 16
  %v332 = vor.u32 %v330, %v328
  %v334 = vshll.u32 %v308, 16
  %v336 = vrot.slane %v334, 1
  %v337 = vsel %vm37, %v332, %v336
  %v338 = vshrl.u32 %v308, 16
  %v340 = vor.u32 %v338, %v336
  %v342 = vshll.u32 %v309, 16
  %v344 = vrot.slane %v342, 1
  %v345 = vsel %vm37, %v340, %v344
  %v346 = vshrl.u32 %v309, 16
  %v349 = vsel %vm76, %v321, 0
  %v352 = vsel %vm76, %v329, 0
  %v355 = vsel %vm76, %v337, 0
  %v358 = vsel %vm76, %v345, 0
  %v361 = vsel %vm76, %v346, 0
  %363 = vmatpush.bf16.msra.mxu0 0
  %364 = vmatpush.bf16.msra.mxu0 0
  %365 = vmatpush.bf16.msra.mxu0 0
  %366 = vmatpush.bf16.msra.mxu0 0
  %367 = vmatpush.bf16.msra.mxu0 0
  %368 = vmatpush.bf16.msra.mxu0 0
  %369 = vmatpush.bf16.msra.mxu0 0
  %370 = vmatpush.bf16.msra.mxu0 %v94
  %371 = vmatmul.bf16.gmra.mxu0 %v349
  %v372 = vpop.f32.mrf.mxu0
  %v373 = vadd.f32 0.0, %v372
  %v374 = vpop.f32.mrf.mxu0
  %v375 = vadd.f32 0.0, %v374
  %376 = vmatmul.bf16.gmra.mxu0 %v352
  %v377 = vpop.f32.mrf.mxu0
  %v378 = vadd.f32 0.0, %v377
  %v379 = vpop.f32.mrf.mxu0
  %v380 = vadd.f32 0.0, %v379
  %381 = vmatmul.bf16.gmra.mxu0 %v355
  %v382 = vpop.f32.mrf.mxu0
  %v383 = vadd.f32 0.0, %v382
  %v384 = vpop.f32.mrf.mxu0
  %v385 = vadd.f32 0.0, %v384
  %386 = vmatmul.bf16.gmra.mxu0 %v358
  %v387 = vpop.f32.mrf.mxu0
  %v388 = vadd.f32 0.0, %v387
  %v389 = vpop.f32.mrf.mxu0
  %v390 = vadd.f32 0.0, %v389
  %391 = vmatmul.bf16.gmra.mxu0 %v361
  %v392 = vpop.f32.mrf.mxu0
  %v393 = vadd.f32 0.0, %v392
  %v394 = vpop.f32.mrf.mxu0
  %395 = vdwg.mxu0
  %v396 = vsel %vm76, %v305, 0
  %v398 = vsel %vm76, %v306, 0
  %v400 = vsel %vm76, %v307, 0
  %v402 = vsel %vm76, %v308, 0
  %v404 = vsel %vm76, %v309, 0
  %406 = vmatpush.bf16.msra.mxu0 0
  %407 = vmatpush.bf16.msra.mxu0 0
  %408 = vmatpush.bf16.msra.mxu0 0
  %409 = vmatpush.bf16.msra.mxu0 0
  %410 = vmatpush.bf16.msra.mxu0 0
  %411 = vmatpush.bf16.msra.mxu0 0
  %412 = vmatpush.bf16.msra.mxu0 0
  %413 = vmatpush.bf16.msra.mxu0 %v140
  %414 = vmatmul.bf16.gmra.mxu0 %v396
  %v415 = vpop.f32.mrf.mxu0
  %v416 = vadd.f32 %v373, %v415
  %v417 = vpop.f32.mrf.mxu0
  %v418 = vadd.f32 %v375, %v417
  %419 = vmatmul.bf16.gmra.mxu0 %v398
  %v420 = vpop.f32.mrf.mxu0
  %v421 = vadd.f32 %v378, %v420
  %v422 = vpop.f32.mrf.mxu0
  %v423 = vadd.f32 %v380, %v422
  %424 = vmatmul.bf16.gmra.mxu0 %v400
  %v425 = vpop.f32.mrf.mxu0
  %v426 = vadd.f32 %v383, %v425
  %v427 = vpop.f32.mrf.mxu0
  %v428 = vadd.f32 %v385, %v427
  %429 = vmatmul.bf16.gmra.mxu0 %v402
  %v430 = vpop.f32.mrf.mxu0
  %v431 = vadd.f32 %v388, %v430
  %v432 = vpop.f32.mrf.mxu0
  %v433 = vadd.f32 %v390, %v432
  %434 = vmatmul.bf16.gmra.mxu0 %v404
  %v435 = vpop.f32.mrf.mxu0
  %v436 = vadd.f32 %v393, %v435
  %v437 = vpop.f32.mrf.mxu0
  %438 = vdwg.mxu0
  %v444 = vrot.slane %v305, 1
  %v445 = vrot.slane %v306, 1
  %v446 = vsel %vm181, %v444, %v445
  %v447 = vrot.slane %v307, 1
  %v448 = vsel %vm181, %v445, %v447
  %v449 = vrot.slane %v308, 1
  %v450 = vsel %vm181, %v447, %v449
  %v451 = vrot.slane %v309, 1
  %v452 = vsel %vm181, %v449, %v451
  %v454 = vsel %vm76, %v446, 0
  %v457 = vsel %vm76, %v448, 0
  %v460 = vsel %vm76, %v450, 0
  %v463 = vsel %vm76, %v452, 0
  %v466 = vsel %vm76, %v451, 0
  %468 = vmatpush.bf16.msra.mxu0 0
  %469 = vmatpush.bf16.msra.mxu0 0
  %470 = vmatpush.bf16.msra.mxu0 0
  %471 = vmatpush.bf16.msra.mxu0 0
  %472 = vmatpush.bf16.msra.mxu0 0
  %473 = vmatpush.bf16.msra.mxu0 0
  %474 = vmatpush.bf16.msra.mxu0 0
  %475 = vmatpush.bf16.msra.mxu0 %v207
  %476 = vmatmul.bf16.gmra.mxu0 %v454
  %v477 = vpop.f32.mrf.mxu0
  %v478 = vadd.f32 0.0, %v477
  %v479 = vpop.f32.mrf.mxu0
  %v480 = vadd.f32 0.0, %v479
  %481 = vmatmul.bf16.gmra.mxu0 %v457
  %v482 = vpop.f32.mrf.mxu0
  %v483 = vadd.f32 0.0, %v482
  %v484 = vpop.f32.mrf.mxu0
  %v485 = vadd.f32 0.0, %v484
  %486 = vmatmul.bf16.gmra.mxu0 %v460
  %v487 = vpop.f32.mrf.mxu0
  %v488 = vadd.f32 0.0, %v487
  %v489 = vpop.f32.mrf.mxu0
  %v490 = vadd.f32 0.0, %v489
  %491 = vmatmul.bf16.gmra.mxu0 %v463
  %v492 = vpop.f32.mrf.mxu0
  %v493 = vadd.f32 0.0, %v492
  %v494 = vpop.f32.mrf.mxu0
  %v495 = vadd.f32 0.0, %v494
  %496 = vmatmul.bf16.gmra.mxu0 %v466
  %v497 = vpop.f32.mrf.mxu0
  %v498 = vadd.f32 0.0, %v497
  %v499 = vpop.f32.mrf.mxu0
  %500 = vdwg.mxu0
  %v501 = vadd.f32 %v416, %v478
  %v502 = vadd.f32 %v418, %v480
  %v503 = vadd.f32 %v421, %v483
  %v504 = vadd.f32 %v423, %v485
  %v505 = vadd.f32 %v426, %v488
  %v506 = vadd.f32 %v428, %v490
  %v507 = vadd.f32 %v431, %v493
  %v508 = vadd.f32 %v433, %v495
  %v509 = vadd.f32 %v436, %v498
  %v510 = vadd.f32 %v501, %v251
  %v511 = vadd.f32 %v502, %v251
  %v512 = vadd.f32 %v503, %v251
  %v513 = vadd.f32 %v504, %v251
  %v514 = vadd.f32 %v505, %v251
  %v515 = vadd.f32 %v506, %v251
  %v516 = vadd.f32 %v507, %v251
  %v517 = vadd.f32 %v508, %v251
  %v518 = vadd.f32 %v509, %v251
  %v519 = vmax.f32 %v510, 0.0
  %v520 = vmax.f32 %v511, 0.0
  %v521 = vmax.f32 %v512, 0.0
  %v522 = vmax.f32 %v513, 0.0
  %v523 = vmax.f32 %v514, 0.0
  %v524 = vmax.f32 %v515, 0.0
  %v525 = vmax.f32 %v516, 0.0
  %v526 = vmax.f32 %v517, 0.0
  %v527 = vmax.f32 %v518, 0.0
  %v528 = vsel %vm270, %v519, -inf
  %v529 = vsel %vm270, %v520, -inf
  %v530 = vsel %vm270, %v521, -inf
  %v531 = vsel %vm270, %v522, -inf
  %v532 = vsel %vm270, %v523, -inf
  %v533 = vmax.f32 %v528, %v532
  %v534 = vsel %vm270, %v524, -inf
  %v535 = vmax.f32 %v529, %v534
  %v536 = vsel %vm270, %v525, -inf
  %v537 = vmax.f32 %v530, %v536
  %v538 = vsel %vm270, %v526, -inf
  %v539 = vmax.f32 %v531, %v538
  %v540 = vsel %vm283, %v527, -inf
  %v541 = vmax.f32 %v533, %v540
  %v542 = vmax.f32 %v541, %v535
  %v543 = vmax.f32 %v537, %v539
  %v544 = vmax.f32 %v542, %v543
  %v545 = vrot.slane %v544, 4
  %v546 = vmax.f32 %v544, %v545
  %v547 = vrot.slane %v546, 2
  %v548 = vmax.f32 %v546, %v547
  %v549 = vrot.slane %v548, 1
  %v550 = vmax.f32 %v548, %v549
  %vm551 = vcmask 1040384
  %v552 = vsel %vm551, %v294, %v550
  %v553 = vperm.slane %v20, 0
  %v554 = vmul.f32 %v552, %v553
  %vm555 = vcmask 517120
  %v556 = vsel %vm555, %v554, 0.0
  %557 = vadd.xlane.f32.xlu0 %v556
  %v558 = vpop.xlane.xlu0 %557
  %s559 = sld [smem:[#allocation2]]
  %v560 = vstv %s559
  %v561 = vadd.f32 %v558, %v560
  %v562 = vxor.u32 %v561, 2147483648
  %v563 = vmul.f32 %v562, 1.442695
  %v564 = vpow.pop %v563
  %v565 = vadd.f32 %v564, 1.0
  %v566 = vrcp.pop %v565
  %v567 = vmul.f32 %v565, %v566
  %v568 = vsub.f32 1.0, %v567
  %v569 = vmul.f32 %v566, %v568
  %v570 = vadd.f32 %v566, %v569
  %vm571 = vweird.f32 %v565
  %vm572 = vweird.f32 %v566
  %vm573 = vmor %vm571, %vm572
  %v574 = vsel %vm573, %v566, %v570
  %v575 = vand.u32 2147483647, %v565
  %vm576 = vcmp.eq.f32.partialorder %v575, 8.507059e+37
  %v577 = vand.u32 %v565, 2147483648
  %v578 = vor.u32 1.1754944e-38, %v577
  %v579 = vsel %vm576, %v578, %v574
  %v580 = vmul.f32 1.0, %v579
  %vm581 = vcmask 1024
  %582 = vst.msk [vmem:[%s4] sm:$0x3] %vm581, %v580
  // Predicated region
  $region18: #{tpu_custom_call.1} parent=0 // pred_check
    _
  $region19: #{tpu_custom_call.1} parent=0 // pred_check_branch
    %584 = sbr.rel (0) target = $region21
  $region20: #{tpu_custom_call.1} parent=0 // pred_region
    _
  $region21: #{tpu_custom_call.1} parent=0 // pred_fallthru
    _
  // Predicated region
  $region22: #{tpu_custom_call.1} parent=0 // pred_check
    _
  $region23: #{tpu_custom_call.1} parent=0 // pred_check_branch
    %586 = sbr.rel (0) target = $region25
  $region24: #{tpu_custom_call.1} parent=0 // pred_region
    _
  $region25: #{tpu_custom_call.1} parent=0 // pred_fallthru
    _

</llo_original>
